<compile_context>
chip_gen: v7x
topology: tpu7x:2x2x1
jax: 0.10.0
libtpu: 0.0.40
codegen_flags: <defaults>
</compile_context>

<pallas_src>
import functools

import jax
import jax.numpy as jnp
from jax.experimental import pallas as pl
from jax.experimental.pallas import tpu as pltpu


def _conv_kernel(w_ref, p_ref, o_ref):
    # w_ref : (O, KKC_pad)         folded dense conv weight (zero-padded K*K*C)
    # p_ref : (KKC_pad, N*P_pad)   im2col'd activations, batch folded into lanes
    # o_ref : (N, O, P_pad)        NCHW-ordered output (lane dim = spatial)
    acc = jnp.dot(w_ref[...], p_ref[...], preferred_element_type=jnp.float32)
    n_batch, _, p_pad = o_ref.shape
    for n in range(n_batch):  # static, tiny batch -> fully unrolled
        # lane slice at a multiple of 128 -> whole-vreg selection, no relayout
        o_ref[n] = acc[:, n * p_pad:(n + 1) * p_pad].astype(o_ref.dtype)


@functools.partial(jax.jit, static_argnames=("stride", "padding", "dilation"))
def fused_separable_conv2d(x_nchw, w_depth, w_point, *, stride=1, padding=0,
                           dilation=1):
    """Eval-mode forward of the PyTorch Model.

    x_nchw : (N, C, H, W)
    w_depth: (C, 1, K, K)   depthwise conv weight (groups=C)
    w_point: (O, C, 1, 1)   pointwise conv weight
    Returns: (N, O, OH, OW) in PyTorch NCHW layout.
    """
    assert stride == 1 and dilation == 1, "only the module's default config"
    # TODO(synk): bias path of the module not implemented (config uses bias=False).
    N, C, H, W = x_nchw.shape
    O = w_point.shape[0]
    K = w_depth.shape[-1]

    # --- glue: fold depthwise x pointwise into one dense conv weight ---
    # combined[o, c, kh, kw] = w_point[o, c] * w_depth[c, 0, kh, kw]
    combined = (w_point[:, :, 0, 0][:, :, None, None]
                * w_depth[None, :, 0, :, :])                    # (O, C, K, K)
    # kernel weight layout: (O, K*K*C), flat index = kh*K*C + kw*C + c
    KKC = K * K * C
    w_flat = jnp.transpose(combined, (0, 2, 3, 1)).reshape(O, KKC)

    # --- glue: optional spatial padding, then im2col ---
    x = x_nchw
    if padding > 0:
        x = jnp.pad(x, ((0, 0), (0, 0), (padding, padding), (padding, padding)))
    Hp, Wp = x.shape[2], x.shape[3]
    OH = Hp - (K - 1)
    OW = Wp - (K - 1)
    P = OH * OW

    taps = []
    for kh in range(K):
        for kw in range(K):
            taps.append(x[:, :, kh:kh + OH, kw:kw + OW])        # (N, C, OH, OW)
    # stacked flat index over (tap, c) matches w_flat's (kh, kw, c) ordering
    patches = jnp.stack(taps, axis=1).reshape(N, KKC, P)        # (N, KKC, P)

    # pad the spatial (lane) dim to a multiple of 128 for aligned vld/vst
    P_pad = ((P + 127) // 128) * 128
    if P_pad != P:
        patches = jnp.pad(patches, ((0, 0), (0, 0), (0, P_pad - P)))

    # fold the batch into the lane dimension: (KKC, N*P_pad)
    patches = jnp.transpose(patches, (1, 0, 2)).reshape(KKC, N * P_pad)

    # pad the contraction dim to a sublane multiple (8 for f32) in both
    # operands so the VMEM layouts match their padded allocations exactly
    KKC_pad = ((KKC + 7) // 8) * 8
    if KKC_pad != KKC:
        w_flat = jnp.pad(w_flat, ((0, 0), (0, KKC_pad - KKC)))
        patches = jnp.pad(patches, ((0, KKC_pad - KKC), (0, 0)))

    out_flat = pl.pallas_call(
        _conv_kernel,
        out_shape=jax.ShapeDtypeStruct((N, O, P_pad), x_nchw.dtype),
        in_specs=[
            pl.BlockSpec(memory_space=pltpu.MemorySpace.VMEM),
            pl.BlockSpec(memory_space=pltpu.MemorySpace.VMEM),
        ],
        out_specs=pl.BlockSpec(memory_space=pltpu.MemorySpace.VMEM),
    )(w_flat, patches)

    # drop the spatial padding; contiguous reshape to NCHW (no transpose)
    return out_flat[:, :, :P].reshape(N, O, OH, OW)


@jax.jit
def _reference(x_nchw, w_depth, w_point):
    """Pure-JAX reference: folded dense conv (== depthwise then pointwise)."""
    combined = (w_point[:, :, 0, 0][:, :, None, None]
                * w_depth[None, :, 0, :, :])                    # (O, C, K, K)
    return jax.lax.conv_general_dilated(
        x_nchw, combined, window_strides=(1, 1), padding="VALID",
        dimension_numbers=("NCHW", "OIHW", "NCHW"))


if __name__ == "__main__":
    # Module config: in_channels=4, out_channels=8, kernel_size=3, bias=False
    N, C, O, K, H, W = 2, 4, 8, 3, 16, 16

    key = jax.random.PRNGKey(0)
    kx, kd, kp = jax.random.split(key, 3)
    x = jax.random.normal(kx, (N, C, H, W), dtype=jnp.float32)
    w_depth = jax.random.normal(kd, (C, 1, K, K), dtype=jnp.float32) * 0.1
    w_point = jax.random.normal(kp, (O, C, 1, 1), dtype=jnp.float32) * 0.1

    out = fused_separable_conv2d(x, w_depth, w_point)
    out = jax.block_until_ready(out)

    ref = jax.block_until_ready(_reference(x, w_depth, w_point))
    assert out.shape == (N, O, H - K + 1, W - K + 1), out.shape
    assert jnp.allclose(out, ref, atol=1e-4, rtol=1e-4), (
        float(jnp.max(jnp.abs(out - ref))))

    print("KERNEL_OK")
</pallas_src>

<mosaic_0001>
module attributes {stable_mosaic.version = 11 : i64} {
  func.func @_conv_kernel(%arg0: memref<8x40xf32, #tpu.memory_space<vmem>>, %arg1: memref<40x512xf32, #tpu.memory_space<vmem>>, %arg2: memref<2x8x256xf32, #tpu.memory_space<vmem>>) attributes {dimension_semantics = [], scalar_prefetch = 0 : i64, scratch_operands = 0 : i64, tpu.core_type = #tpu.core_type<tc>} {
    %c0 = arith.constant 0 : index
    %c0_0 = arith.constant 0 : index
    %0 = vector.load %arg0[%c0, %c0_0] : memref<8x40xf32, #tpu.memory_space<vmem>>, vector<8x40xf32>
    %c0_1 = arith.constant 0 : index
    %c0_2 = arith.constant 0 : index
    %1 = vector.load %arg1[%c0_1, %c0_2] : memref<40x512xf32, #tpu.memory_space<vmem>>, vector<40x512xf32>
    %cst = arith.constant dense<0.000000e+00> : vector<8x512xf32>
    %2 = tpu.matmul %0, %1, %cst {dimension_numbers = #tpu.dot_dimension_numbers<[1], [0], [0], [1], [0, 0, 1, 1], [], []>} : vector<8x40xf32>, vector<40x512xf32>, vector<8x512xf32> -> vector<8x512xf32>
    %3 = vector.extract_strided_slice %2 {offsets = [0, 0], sizes = [8, 256], strides = [1, 1]} : vector<8x512xf32> to vector<8x256xf32>
    %c0_3 = arith.constant 0 : index
    %c0_4 = arith.constant 0 : index
    %c0_5 = arith.constant 0 : index
    %4 = vector.load %arg2[%c0_3, %c0_4, %c0_5] : memref<2x8x256xf32, #tpu.memory_space<vmem>>, vector<1x8x256xf32>
    %5 = vector.shape_cast %4 : vector<1x8x256xf32> to vector<8x256xf32>
    %6 = vector.shape_cast %3 : vector<8x256xf32> to vector<1x8x256xf32>
    tpu.vector_store %arg2[%c0_3, %c0_4, %c0_5], %6 {strides = array<i32>} : memref<2x8x256xf32, #tpu.memory_space<vmem>>, vector<1x8x256xf32>,
    %7 = vector.extract_strided_slice %2 {offsets = [0, 256], sizes = [8, 256], strides = [1, 1]} : vector<8x512xf32> to vector<8x256xf32>
    %c1 = arith.constant 1 : index
    %c0_6 = arith.constant 0 : index
    %c0_7 = arith.constant 0 : index
    %8 = vector.load %arg2[%c1, %c0_6, %c0_7] : memref<2x8x256xf32, #tpu.memory_space<vmem>>, vector<1x8x256xf32>
    %9 = vector.shape_cast %8 : vector<1x8x256xf32> to vector<8x256xf32>
    %10 = vector.shape_cast %7 : vector<8x256xf32> to vector<1x8x256xf32>
    tpu.vector_store %arg2[%c1, %c0_6, %c0_7], %10 {strides = array<i32>} : memref<2x8x256xf32, #tpu.memory_space<vmem>>, vector<1x8x256xf32>,
    return
  }
}

</mosaic_0001>

<llo_original>
// kernel: fused_separable_conv2d.1
$region0: #{fused_separable_conv2d.1}
  #allocation0 [shape = 'u32[]', space=smem, size = 0x4, offset = 0x4, fixed_abs, tag = 'smem constant byte address 0x4 - core index']
  #allocation1 [shape = 'u32[144,128]{1,0:T(1,128)}', space=vmem, size = 0x12000, scoped, tag = 'internal scratch']
  %s0 = inlined_call_operand.vmem [shape: f32[8,40], index: 0, kind: input, shape index: {}]
  %s1 = inlined_call_operand.vmem [shape: f32[40,512], index: 1, kind: input, shape index: {}]
  %s2 = inlined_call_operand.vmem [shape: f32[2,8,256], index: 2, kind: output, shape index: {}]
  %s3 = sld [smem:[#allocation0]]
  $region18: #{fused_separable_conv2d.1} parent=0
    _
  %s5 = ssub.s32 1, %s3
  %s6 = scalar_select 0, %s5, %s3
  // Predicated region
  $region2: #{fused_separable_conv2d.1} parent=0 // pred_check
    _
  $region3: #{fused_separable_conv2d.1} parent=0 // pred_check_branch
    %8 = sbr.rel (0) target = $region5
  $region4: #{fused_separable_conv2d.1} parent=0 // pred_region
    _
  $region5: #{fused_separable_conv2d.1} parent=0 // pred_fallthru
    _
  // Predicated region
  $region6: #{fused_separable_conv2d.1} parent=0 // pred_check
    _
  $region7: #{fused_separable_conv2d.1} parent=0 // pred_check_branch
    %10 = sbr.rel (0) target = $region9
  $region8: #{fused_separable_conv2d.1} parent=0 // pred_region
    _
  $region9: #{fused_separable_conv2d.1} parent=0 // pred_fallthru
    _
  %v11 = vld [vmem:[%s0] sm:$0xff]
  %v12 = vld [vmem:[%s1] sm:$0xff]
  %v13 = vld [vmem:[%s1 + $0x8] sm:$0xff]
  %v14 = vld [vmem:[%s1 + $0x10] sm:$0xff]
  %v15 = vld [vmem:[%s1 + $0x18] sm:$0xff]
  %v16 = vld [vmem:[%s1 + $0x20] sm:$0xff]
  %v17 = vld [vmem:[%s1 + $0x28] sm:$0xff]
  %v18 = vld [vmem:[%s1 + $0x30] sm:$0xff]
  %v19 = vld [vmem:[%s1 + $0x38] sm:$0xff]
  %v20 = vld [vmem:[%s1 + $0x40] sm:$0xff]
  %v21 = vld [vmem:[%s1 + $0x48] sm:$0xff]
  %v22 = vld [vmem:[%s1 + $0x50] sm:$0xff]
  %v23 = vld [vmem:[%s1 + $0x58] sm:$0xff]
  %v24 = vld [vmem:[%s1 + $0x60] sm:$0xff]
  %v25 = vld [vmem:[%s1 + $0x68] sm:$0xff]
  %v26 = vld [vmem:[%s1 + $0x70] sm:$0xff]
  %v27 = vld [vmem:[%s1 + $0x78] sm:$0xff]
  %v28 = vld [vmem:[%s1 + $0x80] sm:$0xff]
  %v29 = vld [vmem:[%s1 + $0x88] sm:$0xff]
  %v30 = vld [vmem:[%s1 + $0x90] sm:$0xff]
  %v31 = vld [vmem:[%s1 + $0x98] sm:$0xff]
  %vm32 = vcmask 326656
  %v34 = vsel %vm32, %v11, 0
  %36 = vmatprep.subr.mxu0 %v13
  %37 = vmatpush1.msra.mxu0 %v12
  %38 = vmatprep.subr.mxu0 %v17
  %39 = vmatpush1.msra.mxu0 %v16
  %40 = vmatprep.subr.mxu0 %v21
  %41 = vmatpush1.msra.mxu0 %v20
  %42 = vmatprep.subr.mxu0 %v25
  %43 = vmatpush1.msra.mxu0 %v24
  %44 = vmatprep.subr.mxu0 %v29
  %45 = vmatpush1.msra.mxu0 %v28
  %46 = vmatprep.subr.mxu0 0.0
  %47 = vmatpush1.msra.mxu0 0.0
  %48 = vmatprep.subr.mxu0 0.0
  %49 = vmatpush1.msra.mxu0 0.0
  %50 = vmatprep.subr.mxu0 0.0
  %51 = vmatpush1.msra.mxu0 0.0
  %52 = vmatprep.subr.mxu0 0.0
  %53 = vmatpush1.msra.mxu0 0.0
  %54 = vmatprep.subr.mxu0 0.0
  %55 = vmatpush1.msra.mxu0 0.0
  %56 = vmatprep.subr.mxu0 0.0
  %57 = vmatpush1.msra.mxu0 0.0
  %58 = vmatprep.subr.mxu0 0.0
  %59 = vmatpush1.msra.mxu0 0.0
  %60 = vmatprep.subr.mxu0 0.0
  %61 = vmatpush1.msra.mxu0 0.0
  %62 = vmatprep.subr.mxu0 0.0
  %63 = vmatpush1.msra.mxu0 0.0
  %64 = vmatprep.subr.mxu0 0.0
  %65 = vmatpush1.msra.mxu0 0.0
  %66 = vmatprep.subr.mxu0 0.0
  %67 = vmatpush1.msra.mxu0 0.0
  %68 = vmatprep.subr.mxu0 0.0
  %69 = vmatpush1.msra.mxu0 0.0
  %70 = vmatprep.subr.mxu0 0.0
  %71 = vmatpush1.msra.mxu0 0.0
  %72 = vmatprep.subr.mxu0 0.0
  %73 = vmatpush1.msra.mxu0 0.0
  %74 = vmatprep.subr.mxu0 0.0
  %75 = vmatpush1.msra.mxu0 0.0
  %76 = vmatprep.subr.mxu0 0.0
  %77 = vmatpush1.msra.mxu0 0.0
  %78 = vmatprep.subr.mxu0 0.0
  %79 = vmatpush1.msra.mxu0 0.0
  %80 = vmatprep.subr.mxu0 0.0
  %81 = vmatpush1.msra.mxu0 0.0
  %82 = vmatprep.subr.mxu0 0.0
  %83 = vmatpush1.msra.mxu0 0.0
  %84 = vmatprep.subr.mxu0 0.0
  %85 = vmatpush1.msra.mxu0 0.0
  %86 = vmatprep.subr.mxu0 0.0
  %87 = vmatpush1.msra.mxu0 0.0
  %88 = vmatprep.subr.mxu0 0.0
  %89 = vmatpush1.msra.mxu0 0.0
  %90 = vmatprep.subr.mxu0 0.0
  %91 = vmatpush1.msra.mxu0 0.0
  %92 = vmatprep.subr.mxu0 0.0
  %93 = vmatpush1.msra.mxu0 0.0
  %94 = vmatprep.subr.mxu0 0.0
  %95 = vmatpush1.msra.mxu0 0.0
  %96 = vmatprep.subr.mxu0 0.0
  %97 = vmatpush1.msra.mxu0 0.0
  %98 = vmatprep.subr.mxu0 0.0
  %99 = vmatpush1.msra.mxu0 0.0
  %100 = vmatprep.mubr.f32.mxu0 0.0
  %101 = vmatmul.mubr.f32.gmra.mrb[0].mxu0 %v34
  %v102 = vpop.f32.mrb[0].mxu0
  %v103 = vadd.f32 0.0, %v102
  %v104 = vpop.f32.mrb[0].mxu0
  %v105 = vadd.f32 0.0, %v104
  %106 = vdwg.mxu0
  %107 = vmatprep.subr.mxu0 %v15
  %108 = vmatpush1.msra.mxu0 %v14
  %109 = vmatprep.subr.mxu0 %v19
  %110 = vmatpush1.msra.mxu0 %v18
  %111 = vmatprep.subr.mxu0 %v23
  %112 = vmatpush1.msra.mxu0 %v22
  %113 = vmatprep.subr.mxu0 %v27
  %114 = vmatpush1.msra.mxu0 %v26
  %115 = vmatprep.subr.mxu0 %v31
  %116 = vmatpush1.msra.mxu0 %v30
  %117 = vmatprep.subr.mxu0 0.0
  %118 = vmatpush1.msra.mxu0 0.0
  %119 = vmatprep.subr.mxu0 0.0
  %120 = vmatpush1.msra.mxu0 0.0
  %121 = vmatprep.subr.mxu0 0.0
  %122 = vmatpush1.msra.mxu0 0.0
  %123 = vmatprep.subr.mxu0 0.0
  %124 = vmatpush1.msra.mxu0 0.0
  %125 = vmatprep.subr.mxu0 0.0
  %126 = vmatpush1.msra.mxu0 0.0
  %127 = vmatprep.subr.mxu0 0.0
  %128 = vmatpush1.msra.mxu0 0.0
  %129 = vmatprep.subr.mxu0 0.0
  %130 = vmatpush1.msra.mxu0 0.0
  %131 = vmatprep.subr.mxu0 0.0
  %132 = vmatpush1.msra.mxu0 0.0
  %133 = vmatprep.subr.mxu0 0.0
  %134 = vmatpush1.msra.mxu0 0.0
  %135 = vmatprep.subr.mxu0 0.0
  %136 = vmatpush1.msra.mxu0 0.0
  %137 = vmatprep.subr.mxu0 0.0
  %138 = vmatpush1.msra.mxu0 0.0
  %139 = vmatprep.subr.mxu0 0.0
  %140 = vmatpush1.msra.mxu0 0.0
  %141 = vmatprep.subr.mxu0 0.0
  %142 = vmatpush1.msra.mxu0 0.0
  %143 = vmatprep.subr.mxu0 0.0
  %144 = vmatpush1.msra.mxu0 0.0
  %145 = vmatprep.subr.mxu0 0.0
  %146 = vmatpush1.msra.mxu0 0.0
  %147 = vmatprep.subr.mxu0 0.0
  %148 = vmatpush1.msra.mxu0 0.0
  %149 = vmatprep.subr.mxu0 0.0
  %150 = vmatpush1.msra.mxu0 0.0
  %151 = vmatprep.subr.mxu0 0.0
  %152 = vmatpush1.msra.mxu0 0.0
  %153 = vmatprep.subr.mxu0 0.0
  %154 = vmatpush1.msra.mxu0 0.0
  %155 = vmatprep.subr.mxu0 0.0
  %156 = vmatpush1.msra.mxu0 0.0
  %157 = vmatprep.subr.mxu0 0.0
  %158 = vmatpush1.msra.mxu0 0.0
  %159 = vmatprep.subr.mxu0 0.0
  %160 = vmatpush1.msra.mxu0 0.0
  %161 = vmatprep.subr.mxu0 0.0
  %162 = vmatpush1.msra.mxu0 0.0
  %163 = vmatprep.subr.mxu0 0.0
  %164 = vmatpush1.msra.mxu0 0.0
  %165 = vmatprep.subr.mxu0 0.0
  %166 = vmatpush1.msra.mxu0 0.0
  %167 = vmatprep.subr.mxu0 0.0
  %168 = vmatpush1.msra.mxu0 0.0
  %169 = vmatprep.subr.mxu0 0.0
  %170 = vmatpush1.msra.mxu0 0.0
  %171 = vmatprep.mubr.f32.mxu0 0.0
  %172 = vmatmul.mubr.f32.gmra.mrb[0].mxu0 %v34
  %v173 = vpop.f32.mrb[0].mxu0
  %v174 = vadd.f32 0.0, %v173
  %v175 = vpop.f32.mrb[0].mxu0
  %v176 = vadd.f32 0.0, %v175
  %177 = vdwg.mxu0
  %178 = vst [vmem:[%s2] sm:$0xff] %v103
  %179 = vst [vmem:[%s2 + $0x8] sm:$0xff] %v105
  %s180 = scalar_lea.vmem %s2, 16
  %181 = vst [vmem:[%s180] sm:$0xff] %v174
  %182 = vst [vmem:[%s180 + $0x8] sm:$0xff] %v176
  // Predicated region
  $region10: #{fused_separable_conv2d.1} parent=0 // pred_check
    _
  $region11: #{fused_separable_conv2d.1} parent=0 // pred_check_branch
    %184 = sbr.rel (0) target = $region13
  $region12: #{fused_separable_conv2d.1} parent=0 // pred_region
    _
  $region13: #{fused_separable_conv2d.1} parent=0 // pred_fallthru
    _
  // Predicated region
  $region14: #{fused_separable_conv2d.1} parent=0 // pred_check
    _
  $region15: #{fused_separable_conv2d.1} parent=0 // pred_check_branch
    %186 = sbr.rel (0) target = $region17
  $region16: #{fused_separable_conv2d.1} parent=0 // pred_region
    _
  $region17: #{fused_separable_conv2d.1} parent=0 // pred_fallthru
    _

</llo_original>
